<compile_context>
chip_gen: v7x
topology: tpu7x:2x2x1
jax: 0.10.0
libtpu: 0.0.40
codegen_flags: <defaults>
</compile_context>

<pallas_src>
import functools

import jax
import jax.numpy as jnp
from jax.experimental import pallas as pl
from jax.experimental.pallas import tpu as pltpu

BN_EPS = 1e-5


def _round_up(x, m):
    return ((x + m - 1) // m) * m


def _dwconv_stats_kernel(x_ref, w_ref, pos_ref, conv_ref, psum_ref, psumsq_ref,
                         *, H, W, C, fold_w):
    """Pass 1: depthwise 3x3 conv for one (lane-group, row-block) tile + per-block stats.

    x_ref    : (R, L)  input rows (R = whole images; L = W*C if fold_w else a 128-channel tile)
    w_ref    : (9, L)  per-lane depthwise weights, kernel-row-major (kh*3 + kw)
    pos_ref  : (R, 2)  int32 per-row [h, w] position within the image (w unused if fold_w)
    conv_ref : (R, L)  conv output tile
    psum_ref, psumsq_ref : (1, L) per-block partial sum / sum-of-squares (f32)
    """
    x = x_ref[...].astype(jnp.float32)            # (R, L)
    R, L = x.shape
    w9 = w_ref[...].astype(jnp.float32)           # (9, L)
    pos = pos_ref[...]                            # (R, 2) int32
    hpos = pos[:, 0:1]                            # (R, 1) row index within the image

    if fold_w:
        # lanes = w*C + c : horizontal (W) shifts are lane rolls by +/-C, masked at the
        # left/right image edge. Pad lanes (>= W*C) carry zero weights, so they self-zero.
        lane = jax.lax.broadcasted_iota(jnp.int32, (1, L), 1)
        x_m = jnp.where(lane < C, 0.0, pltpu.roll(x, C, axis=1))            # x[.., w-1]
        x_p = jnp.where(lane >= (W - 1) * C, 0.0,
                        pltpu.roll(x, (L - C) % L, axis=1))                 # x[.., w+1]
        v_shift = 1                               # vertical (H) shift = 1 row
    else:
        # rows = ((b*H)+h)*W + w : horizontal shifts are sublane rolls by +/-1, masked at
        # the image edge via the precomputed w position.
        wpos = pos[:, 1:2]                        # (R, 1)
        x_m = jnp.where(wpos == 0, 0.0, pltpu.roll(x, 1, axis=0))           # x[.., w-1]
        x_p = jnp.where(wpos == W - 1, 0.0, pltpu.roll(x, (R - 1) % R, axis=0))
        v_shift = W                               # vertical (H) shift = W rows

    xs = (x_m, x, x_p)                            # kw = 0, 1, 2
    t = []
    for kh in range(3):                           # per-kernel-row partial sums
        acc = xs[0] * w9[3 * kh + 0]
        acc = acc + xs[1] * w9[3 * kh + 1]
        acc = acc + xs[2] * w9[3 * kh + 2]
        t.append(acc)

    # Vertical combine: out[i] = t1[i] + t0[i-1] + t2[i+1], zero outside the image.
    out = t[1]
    out = out + jnp.where(hpos == 0, 0.0,
                          pltpu.roll(t[0], v_shift % R, axis=0))
    out = out + jnp.where(hpos == H - 1, 0.0,
                          pltpu.roll(t[2], (R - v_shift) % R, axis=0))

    conv_ref[...] = out.astype(conv_ref.dtype)
    # Per-block partial BN statistics (f32); reduced to per-channel stats outside the kernel.
    psum_ref[...] = jnp.sum(out, axis=0, keepdims=True)
    psumsq_ref[...] = jnp.sum(out * out, axis=0, keepdims=True)


def _bn_relu_kernel(conv_ref, scale_ref, shift_ref, o_ref):
    """Pass 2: fused per-lane scale + shift (from batch stats) + ReLU, in place over conv."""
    y = conv_ref[...].astype(jnp.float32) * scale_ref[...] + shift_ref[...]
    o_ref[...] = jnp.maximum(y, 0.0).astype(o_ref.dtype)


def dw_bn_relu(x, H, W, params):
    """Forward pass of DW_bn_relu.

    x      : (B, N, C) with N == H * W   (same convention as the PyTorch module)
    params : dict with dw_weight (3,3,C), dw_bias (C,), bn_weight (C,), bn_bias (C,)
    returns: (B, N, C)
    """
    B, N, C = x.shape
    assert N == H * W, "N must equal H*W"
    dt = x.dtype
    dsize = jnp.dtype(dt).itemsize

    w9 = params["dw_weight"].reshape(9, C)                # (kh*3 + kw, c)
    gamma = params["bn_weight"].astype(jnp.float32)
    beta = params["bn_bias"].astype(jnp.float32)
    # NOTE: params["dw_bias"] is intentionally not applied in the kernel: a per-channel
    # constant added before training-mode BatchNorm cancels exactly in the output.

    fold_w = C < 128
    if fold_w:
        # Lane-dense small-C layout: rows = B*H, lanes = w*C + c (free reshape of (B,N,C)).
        L_valid = W * C
        Lp = _round_up(L_valid, 128)
        Lt = Lp
        gc = 1
        P = H                                             # rows per image
        num_rows = B * H
        x2 = x.reshape(num_rows, L_valid)
        w_l = jnp.tile(w9, (1, W))                        # (9, W*C), channel-minor
        if Lp != L_valid:
            x2 = jnp.pad(x2, ((0, 0), (0, Lp - L_valid)))
            w_l = jnp.pad(w_l, ((0, 0), (0, Lp - L_valid)))
    else:
        # Channels-on-lanes layout, 128-wide channel tiles: rows = B*H*W.
        L_valid = C
        Lp = _round_up(C, 128)
        Lt = 128
        gc = Lp // 128
        P = H * W
        num_rows = B * H * W
        x2 = x.reshape(num_rows, C)
        w_l = w9
        if Lp != C:
            x2 = jnp.pad(x2, ((0, 0), (0, Lp - C)))
            w_l = jnp.pad(w_l, ((0, 0), (0, Lp - C)))
    w_l = w_l.astype(dt)

    # Within-image (h, w) row codes for the halo edge masks (plain XLA, tiny).
    r = jnp.arange(num_rows, dtype=jnp.int32)
    if fold_w:
        pos = jnp.stack([r % H, jnp.zeros_like(r)], axis=1)
    else:
        pos = jnp.stack([(r // W) % H, r % W], axis=1)

    # Batch-blocked row tiles: ~1 MiB per input buffer, blocks aligned to whole images.
    row_bytes = Lt * dsize
    bt_cap = max(1, (1 << 20) // max(1, P * row_bytes))
    Bt = B                                                # fallback: full batch (always legal)
    for d in range(min(B, bt_cap), 0, -1):
        if B % d == 0 and (d * P) % 8 == 0:
            Bt = d
            break
    Rb = Bt * P
    nB = B // Bt
    grid = (gc, nB)

    # Generation-aware VMEM budget: leave headroom below physical capacity.
    try:
        cap = int(pltpu.get_tpu_info().vmem_capacity_bytes)
    except Exception:
        cap = 64 * 2 ** 20
    need = Rb * Lt * (4 * dsize + 12 * 4) + 4 * (11 * Lt + 2 * Rb) * 4
    vmem_limit = int(min(int(0.75 * cap), max(need, 32 * 2 ** 20)))

    x_spec = pl.BlockSpec((Rb, Lt), lambda ci, bi: (bi, ci))
    w_spec = pl.BlockSpec((9, Lt), lambda ci, bi: (0, ci))
    pos_spec = pl.BlockSpec((Rb, 2), lambda ci, bi: (bi, 0))
    vec_spec = pl.BlockSpec((1, Lt), lambda ci, bi: (0, ci))
    stat_spec = pl.BlockSpec((None, 1, Lt), lambda ci, bi: (bi, 0, ci))

    kernel1 = functools.partial(_dwconv_stats_kernel, H=H, W=W, C=C, fold_w=fold_w)

    # ---- pass 1: depthwise conv + per-block partial sum / sumsq -------------------------
    conv, psum, psumsq = pl.pallas_call(
        kernel1,
        out_shape=(
            jax.ShapeDtypeStruct((num_rows, Lp), dt),
            jax.ShapeDtypeStruct((nB, 1, Lp), jnp.float32),
            jax.ShapeDtypeStruct((nB, 1, Lp), jnp.float32),
        ),
        grid_spec=pltpu.PrefetchScalarGridSpec(
            num_scalar_prefetch=0,
            grid=grid,
            in_specs=[x_spec, w_spec, pos_spec],
            out_specs=(x_spec, stat_spec, stat_spec),
        ),
        compiler_params=pltpu.CompilerParams(
            dimension_semantics=("parallel", "parallel"),
            vmem_limit_bytes=vmem_limit,
        ),
    )(x2, w_l, pos)

    # ---- tiny XLA epilogue: batch stats -> per-channel scale/shift ----------------------
    inv_n = 1.0 / float(B * H * W)
    s1 = jnp.sum(psum, axis=(0, 1))                       # (Lp,)
    s2 = jnp.sum(psumsq, axis=(0, 1))
    if fold_w:
        s1c = s1[:L_valid].reshape(W, C).sum(axis=0)
        s2c = s2[:L_valid].reshape(W, C).sum(axis=0)
    else:
        s1c = s1[:C]
        s2c = s2[:C]
    mean = s1c * inv_n
    var = jnp.maximum(s2c * inv_n - mean * mean, 0.0)     # guard FP cancellation
    scale_c = gamma * jax.lax.rsqrt(var + BN_EPS)
    shift_c = beta - mean * scale_c
    if fold_w:
        scale_l = jnp.tile(scale_c, W)
        shift_l = jnp.tile(shift_c, W)
    else:
        scale_l = scale_c
        shift_l = shift_c
    scale_l = jnp.pad(scale_l, (0, Lp - scale_l.shape[0])).reshape(1, Lp)
    shift_l = jnp.pad(shift_l, (0, Lp - shift_l.shape[0])).reshape(1, Lp)

    # ---- pass 2: scale + shift + ReLU, aliased in place over the conv intermediate ------
    out2 = pl.pallas_call(
        _bn_relu_kernel,
        out_shape=jax.ShapeDtypeStruct((num_rows, Lp), dt),
        grid_spec=pltpu.PrefetchScalarGridSpec(
            num_scalar_prefetch=0,
            grid=grid,
            in_specs=[x_spec, vec_spec, vec_spec],
            out_specs=x_spec,
        ),
        compiler_params=pltpu.CompilerParams(
            dimension_semantics=("parallel", "parallel"),
            vmem_limit_bytes=vmem_limit,
        ),
        input_output_aliases={0: 0},
    )(conv, scale_l, shift_l)

    out2 = out2[:, :L_valid]
    return out2.reshape(B, N, C)


def _reference(x, H, W, params):
    """Pure-JAX reference (matches the PyTorch training-mode forward, bias included)."""
    B, N, C = x.shape
    x_img = x.reshape(B, H, W, C)
    xp = jnp.pad(x_img, ((0, 0), (1, 1), (1, 1), (0, 0)))
    w = params["dw_weight"]
    acc = jnp.zeros((B, H, W, C), jnp.float32)
    for dh in range(3):
        for dw in range(3):
            acc = acc + xp[:, dh:dh + H, dw:dw + W, :].astype(jnp.float32) * w[dh, dw]
    acc = acc + params["dw_bias"]
    mean = jnp.mean(acc, axis=(0, 1, 2), keepdims=True)
    var = jnp.mean((acc - mean) ** 2, axis=(0, 1, 2), keepdims=True)
    y = (acc - mean) * jax.lax.rsqrt(var + BN_EPS) * params["bn_weight"] + params["bn_bias"]
    y = jnp.maximum(y, 0.0)
    return y.reshape(B, N, C)


def init_params(key, dim):
    """Deterministic synthetic parameters (shapes from DW_bn_relu.__init__)."""
    k1, k2, k3, k4 = jax.random.split(key, 4)
    # nn.Conv2d(dim, dim, 3, groups=dim): weight (dim, 1, 3, 3) -> kernel layout (3, 3, dim)
    fan_in = 9.0
    bound = 1.0 / jnp.sqrt(fan_in)
    w = jax.random.uniform(k1, (dim, 1, 3, 3), jnp.float32, -bound, bound)
    dw_weight = jnp.transpose(w[:, 0], (1, 2, 0))          # (3, 3, dim)
    dw_bias = jax.random.uniform(k2, (dim,), jnp.float32, -bound, bound)
    bn_weight = 1.0 + 0.1 * jax.random.normal(k3, (dim,), jnp.float32)
    bn_bias = 0.1 * jax.random.normal(k4, (dim,), jnp.float32)
    return {
        "dw_weight": dw_weight,
        "dw_bias": dw_bias,
        "bn_weight": bn_weight,
        "bn_bias": bn_bias,
    }


if __name__ == "__main__":
    fwd = jax.jit(dw_bn_relu, static_argnums=(1, 2))

    key = jax.random.PRNGKey(0)
    kx, kp, kx2, kp2 = jax.random.split(key, 4)

    # Case 1: small-C path (W folded into lanes). (B, N, C) with N = H*W.
    B, C, H, W = 2, 4, 16, 16
    N = H * W
    x = jax.random.normal(kx, (B, N, C), jnp.float32)
    params = init_params(kp, C)

    out = jax.block_until_ready(fwd(x, H, W, params))
    ref = _reference(x, H, W, params)
    assert out.shape == (B, N, C)
    assert jnp.max(jnp.abs(out - ref)) < 1e-3, "mismatch vs pure-JAX reference (case 1)"

    # Case 2: channels-on-lanes path with channel tiling + lane padding (C > 128, C % 128 != 0).
    B2, C2, H2, W2 = 2, 192, 8, 8
    N2 = H2 * W2
    x2 = jax.random.normal(kx2, (B2, N2, C2), jnp.float32)
    params2 = init_params(kp2, C2)

    out2 = jax.block_until_ready(fwd(x2, H2, W2, params2))
    ref2 = _reference(x2, H2, W2, params2)
    assert out2.shape == (B2, N2, C2)
    assert jnp.max(jnp.abs(out2 - ref2)) < 1e-3, "mismatch vs pure-JAX reference (case 2)"

    print("KERNEL_OK")
</pallas_src>

<mosaic_0001>
module attributes {stable_mosaic.version = 11 : i64} {
  func.func @_dwconv_stats_kernel(%arg0: i32, %arg1: i32, %arg2: memref<32x128xf32, #tpu.memory_space<vmem>>, %arg3: memref<9x128xf32, #tpu.memory_space<vmem>>, %arg4: memref<32x2xi32, #tpu.memory_space<vmem>>, %arg5: memref<32x128xf32, #tpu.memory_space<vmem>>, %arg6: memref<1x1x128xf32, #tpu.memory_space<vmem>>, %arg7: memref<1x1x128xf32, #tpu.memory_space<vmem>>) attributes {dimension_semantics = [#tpu.dimension_semantics<parallel>, #tpu.dimension_semantics<parallel>], iteration_bounds = array<i64: 1, 1>, scalar_prefetch = 0 : i64, scratch_operands = 0 : i64, tpu.core_type = #tpu.core_type<tc>, window_params = [{transform_indices = @transform_0, window_bounds = array<i64: 32, 128>}, {transform_indices = @transform_1, window_bounds = array<i64: 9, 128>}, {transform_indices = @transform_2, window_bounds = array<i64: 32, 2>}, {transform_indices = @transform_3, window_bounds = array<i64: 32, 128>}, {transform_indices = @transform_4, window_bounds = array<i64: 1, 1, 128>}, {transform_indices = @transform_5, window_bounds = array<i64: 1, 1, 128>}]} {
    %c0 = arith.constant 0 : index
    %c0_0 = arith.constant 0 : index
    %0 = vector.load %arg2[%c0, %c0_0] : memref<32x128xf32, #tpu.memory_space<vmem>>, vector<32x128xf32>
    %c0_1 = arith.constant 0 : index
    %c0_2 = arith.constant 0 : index
    %1 = vector.load %arg3[%c0_1, %c0_2] : memref<9x128xf32, #tpu.memory_space<vmem>>, vector<9x128xf32>
    %c0_3 = arith.constant 0 : index
    %c0_4 = arith.constant 0 : index
    %2 = vector.load %arg4[%c0_3, %c0_4] : memref<32x2xi32, #tpu.memory_space<vmem>>, vector<32x2xi32>
    %3 = vector.extract_strided_slice %2 {offsets = [0, 0], sizes = [32, 1], strides = [1, 1]} : vector<32x2xi32> to vector<32x1xi32>
    %4 = tpu.iota {dimensions = array<i32: 1>} : vector<1x128xi32>
    %c4_i32 = arith.constant 4 : i32
    %5 = vector.broadcast %c4_i32 : i32 to vector<1x128xi32>
    %6 = arith.cmpi slt, %4, %5 : vector<1x128xi32>
    %c4_i32_5 = arith.constant 4 : i32
    %7 = tpu.dynamic_rotate %0 by %c4_i32_5 dim 1 : vector<32x128xf32>, i32 -> vector<32x128xf32>
    %cst = arith.constant 0.000000e+00 : f32
    %8 = vector.shape_cast %6 : vector<1x128xi1> to vector<1x128xi1>
    %9 = vector.broadcast %8 : vector<1x128xi1> to vector<32x128xi1>
    %10 = vector.broadcast %cst : f32 to vector<32x128xf32>
    %11 = arith.select %9, %10, %7 : vector<32x128xi1>, vector<32x128xf32>
    %c60_i32 = arith.constant 60 : i32
    %12 = vector.broadcast %c60_i32 : i32 to vector<1x128xi32>
    %13 = arith.cmpi sge, %4, %12 : vector<1x128xi32>
    %c124_i32 = arith.constant 124 : i32
    %14 = tpu.dynamic_rotate %0 by %c124_i32 dim 1 : vector<32x128xf32>, i32 -> vector<32x128xf32>
    %cst_6 = arith.constant 0.000000e+00 : f32
    %15 = vector.shape_cast %13 : vector<1x128xi1> to vector<1x128xi1>
    %16 = vector.broadcast %15 : vector<1x128xi1> to vector<32x128xi1>
    %17 = vector.broadcast %cst_6 : f32 to vector<32x128xf32>
    %18 = arith.select %16, %17, %14 : vector<32x128xi1>, vector<32x128xf32>
    %19 = vector.extract_strided_slice %1 {offsets = [0, 0], sizes = [1, 128], strides = [1, 1]} : vector<9x128xf32> to vector<1x128xf32>
    %20 = vector.shape_cast %19 : vector<1x128xf32> to vector<128xf32>
    %21 = vector.shape_cast %20 : vector<128xf32> to vector<1x128xf32>
    %22 = vector.broadcast %21 : vector<1x128xf32> to vector<32x128xf32>
    %23 = arith.mulf %11, %22 : vector<32x128xf32>
    %24 = vector.extract_strided_slice %1 {offsets = [1, 0], sizes = [1, 128], strides = [1, 1]} : vector<9x128xf32> to vector<1x128xf32>
    %25 = vector.shape_cast %24 : vector<1x128xf32> to vector<128xf32>
    %26 = vector.shape_cast %25 : vector<128xf32> to vector<1x128xf32>
    %27 = vector.broadcast %26 : vector<1x128xf32> to vector<32x128xf32>
    %28 = arith.mulf %0, %27 : vector<32x128xf32>
    %29 = arith.addf %23, %28 : vector<32x128xf32>
    %30 = vector.extract_strided_slice %1 {offsets = [2, 0], sizes = [1, 128], strides = [1, 1]} : vector<9x128xf32> to vector<1x128xf32>
    %31 = vector.shape_cast %30 : vector<1x128xf32> to vector<128xf32>
    %32 = vector.shape_cast %31 : vector<128xf32> to vector<1x128xf32>
    %33 = vector.broadcast %32 : vector<1x128xf32> to vector<32x128xf32>
    %34 = arith.mulf %18, %33 : vector<32x128xf32>
    %35 = arith.addf %29, %34 : vector<32x128xf32>
    %36 = vector.extract_strided_slice %1 {offsets = [3, 0], sizes = [1, 128], strides = [1, 1]} : vector<9x128xf32> to vector<1x128xf32>
    %37 = vector.shape_cast %36 : vector<1x128xf32> to vector<128xf32>
    %38 = vector.shape_cast %37 : vector<128xf32> to vector<1x128xf32>
    %39 = vector.broadcast %38 : vector<1x128xf32> to vector<32x128xf32>
    %40 = arith.mulf %11, %39 : vector<32x128xf32>
    %41 = vector.extract_strided_slice %1 {offsets = [4, 0], sizes = [1, 128], strides = [1, 1]} : vector<9x128xf32> to vector<1x128xf32>
    %42 = vector.shape_cast %41 : vector<1x128xf32> to vector<128xf32>
    %43 = vector.shape_cast %42 : vector<128xf32> to vector<1x128xf32>
    %44 = vector.broadcast %43 : vector<1x128xf32> to vector<32x128xf32>
    %45 = arith.mulf %0, %44 : vector<32x128xf32>
    %46 = arith.addf %40, %45 : vector<32x128xf32>
    %47 = vector.extract_strided_slice %1 {offsets = [5, 0], sizes = [1, 128], strides = [1, 1]} : vector<9x128xf32> to vector<1x128xf32>
    %48 = vector.shape_cast %47 : vector<1x128xf32> to vector<128xf32>
    %49 = vector.shape_cast %48 : vector<128xf32> to vector<1x128xf32>
    %50 = vector.broadcast %49 : vector<1x128xf32> to vector<32x128xf32>
    %51 = arith.mulf %18, %50 : vector<32x128xf32>
    %52 = arith.addf %46, %51 : vector<32x128xf32>
    %53 = vector.extract_strided_slice %1 {offsets = [6, 0], sizes = [1, 128], strides = [1, 1]} : vector<9x128xf32> to vector<1x128xf32>
    %54 = vector.shape_cast %53 : vector<1x128xf32> to vector<128xf32>
    %55 = vector.shape_cast %54 : vector<128xf32> to vector<1x128xf32>
    %56 = vector.broadcast %55 : vector<1x128xf32> to vector<32x128xf32>
    %57 = arith.mulf %11, %56 : vector<32x128xf32>
    %58 = vector.extract_strided_slice %1 {offsets = [7, 0], sizes = [1, 128], strides = [1, 1]} : vector<9x128xf32> to vector<1x128xf32>
    %59 = vector.shape_cast %58 : vector<1x128xf32> to vector<128xf32>
    %60 = vector.shape_cast %59 : vector<128xf32> to vector<1x128xf32>
    %61 = vector.broadcast %60 : vector<1x128xf32> to vector<32x128xf32>
    %62 = arith.mulf %0, %61 : vector<32x128xf32>
    %63 = arith.addf %57, %62 : vector<32x128xf32>
    %64 = vector.extract_strided_slice %1 {offsets = [8, 0], sizes = [1, 128], strides = [1, 1]} : vector<9x128xf32> to vector<1x128xf32>
    %65 = vector.shape_cast %64 : vector<1x128xf32> to vector<128xf32>
    %66 = vector.shape_cast %65 : vector<128xf32> to vector<1x128xf32>
    %67 = vector.broadcast %66 : vector<1x128xf32> to vector<32x128xf32>
    %68 = arith.mulf %18, %67 : vector<32x128xf32>
    %69 = arith.addf %63, %68 : vector<32x128xf32>
    %c0_i32 = arith.constant 0 : i32
    %70 = vector.broadcast %c0_i32 : i32 to vector<32x1xi32>
    %71 = arith.cmpi eq, %3, %70 : vector<32x1xi32>
    %c1_i32 = arith.constant 1 : i32
    %72 = tpu.dynamic_rotate %35 by %c1_i32 dim 0 : vector<32x128xf32>, i32 -> vector<32x128xf32>
    %cst_7 = arith.constant 0.000000e+00 : f32
    %73 = vector.shape_cast %71 : vector<32x1xi1> to vector<32x1xi1>
    %74 = vector.broadcast %73 : vector<32x1xi1> to vector<32x128xi1>
    %75 = vector.broadcast %cst_7 : f32 to vector<32x128xf32>
    %76 = arith.select %74, %75, %72 : vector<32x128xi1>, vector<32x128xf32>
    %77 = arith.addf %52, %76 : vector<32x128xf32>
    %c15_i32 = arith.constant 15 : i32
    %78 = vector.broadcast %c15_i32 : i32 to vector<32x1xi32>
    %79 = arith.cmpi eq, %3, %78 : vector<32x1xi32>
    %c31_i32 = arith.constant 31 : i32
    %80 = tpu.dynamic_rotate %69 by %c31_i32 dim 0 : vector<32x128xf32>, i32 -> vector<32x128xf32>
    %cst_8 = arith.constant 0.000000e+00 : f32
    %81 = vector.shape_cast %79 : vector<32x1xi1> to vector<32x1xi1>
    %82 = vector.broadcast %81 : vector<32x1xi1> to vector<32x128xi1>
    %83 = vector.broadcast %cst_8 : f32 to vector<32x128xf32>
    %84 = arith.select %82, %83, %80 : vector<32x128xi1>, vector<32x128xf32>
    %85 = arith.addf %77, %84 : vector<32x128xf32>
    %c0_9 = arith.constant 0 : index
    %c0_10 = arith.constant 0 : index
    %86 = vector.load %arg5[%c0_9, %c0_10] : memref<32x128xf32, #tpu.memory_space<vmem>>, vector<32x128xf32>
    tpu.vector_store %arg5[%c0_9, %c0_10], %85 {strides = array<i32>} : memref<32x128xf32, #tpu.memory_space<vmem>>, vector<32x128xf32>,
    %cst_11 = arith.constant dense<0.000000e+00> : vector<128xf32>
    %87 = vector.multi_reduction <add>, %85, %cst_11 [0] : vector<32x128xf32> to vector<128xf32>
    %88 = vector.shape_cast %87 : vector<128xf32> to vector<1x128xf32>
    %c0_12 = arith.constant 0 : index
    %c0_13 = arith.constant 0 : index
    %c0_14 = arith.constant 0 : index
    %89 = vector.load %arg6[%c0_12, %c0_13, %c0_14] : memref<1x1x128xf32, #tpu.memory_space<vmem>>, vector<1x1x128xf32>
    %90 = vector.shape_cast %89 : vector<1x1x128xf32> to vector<1x128xf32>
    %91 = vector.shape_cast %88 : vector<1x128xf32> to vector<1x1x128xf32>
    tpu.vector_store %arg6[%c0_12, %c0_13, %c0_14], %91 {strides = array<i32>} : memref<1x1x128xf32, #tpu.memory_space<vmem>>, vector<1x1x128xf32>,
    %92 = arith.mulf %85, %85 : vector<32x128xf32>
    %cst_15 = arith.constant dense<0.000000e+00> : vector<128xf32>
    %93 = vector.multi_reduction <add>, %92, %cst_15 [0] : vector<32x128xf32> to vector<128xf32>
    %94 = vector.shape_cast %93 : vector<128xf32> to vector<1x128xf32>
    %c0_16 = arith.constant 0 : index
    %c0_17 = arith.constant 0 : index
    %c0_18 = arith.constant 0 : index
    %95 = vector.load %arg7[%c0_16, %c0_17, %c0_18] : memref<1x1x128xf32, #tpu.memory_space<vmem>>, vector<1x1x128xf32>
    %96 = vector.shape_cast %95 : vector<1x1x128xf32> to vector<1x128xf32>
    %97 = vector.shape_cast %94 : vector<1x128xf32> to vector<1x1x128xf32>
    tpu.vector_store %arg7[%c0_16, %c0_17, %c0_18], %97 {strides = array<i32>} : memref<1x1x128xf32, #tpu.memory_space<vmem>>, vector<1x1x128xf32>,
    return
  }
  func.func @transform_0(%arg0: i32, %arg1: i32) -> (i32, i32) {
    %c0_i32 = arith.constant 0 : i32
    return %arg1, %arg0 : i32, i32
  }
  func.func @transform_1(%arg0: i32, %arg1: i32) -> (i32, i32) {
    %c0_i32 = arith.constant 0 : i32
    %c0_i32_0 = arith.constant 0 : i32
    return %c0_i32, %arg0 : i32, i32
  }
  func.func @transform_2(%arg0: i32, %arg1: i32) -> (i32, i32) {
    %c0_i32 = arith.constant 0 : i32
    %c0_i32_0 = arith.constant 0 : i32
    return %arg1, %c0_i32 : i32, i32
  }
  func.func @transform_3(%arg0: i32, %arg1: i32) -> (i32, i32) {
    %c0_i32 = arith.constant 0 : i32
    return %arg1, %arg0 : i32, i32
  }
  func.func @transform_4(%arg0: i32, %arg1: i32) -> (i32, i32, i32) {
    %c0_i32 = arith.constant 0 : i32
    %c0_i32_0 = arith.constant 0 : i32
    return %arg1, %c0_i32, %arg0 : i32, i32, i32
  }
  func.func @transform_5(%arg0: i32, %arg1: i32) -> (i32, i32, i32) {
    %c0_i32 = arith.constant 0 : i32
    %c0_i32_0 = arith.constant 0 : i32
    return %arg1, %c0_i32, %arg0 : i32, i32, i32
  }
}

module attributes {stable_mosaic.version = 11 : i64} {
  func.func @_bn_relu_kernel(%arg0: i32, %arg1: i32, %arg2: memref<32x128xf32, #tpu.memory_space<vmem>>, %arg3: memref<1x128xf32, #tpu.memory_space<vmem>>, %arg4: memref<1x128xf32, #tpu.memory_space<vmem>>, %arg5: memref<32x128xf32, #tpu.memory_space<vmem>>) attributes {dimension_semantics = [#tpu.dimension_semantics<parallel>, #tpu.dimension_semantics<parallel>], iteration_bounds = array<i64: 1, 1>, scalar_prefetch = 0 : i64, scratch_operands = 0 : i64, tpu.core_type = #tpu.core_type<tc>, window_params = [{transform_indices = @transform_0, window_bounds = array<i64: 32, 128>}, {transform_indices = @transform_1, window_bounds = array<i64: 1, 128>}, {transform_indices = @transform_2, window_bounds = array<i64: 1, 128>}, {transform_indices = @transform_3, window_bounds = array<i64: 32, 128>}]} {
    %c0 = arith.constant 0 : index
    %c0_0 = arith.constant 0 : index
    %0 = vector.load %arg2[%c0, %c0_0] : memref<32x128xf32, #tpu.memory_space<vmem>>, vector<32x128xf32>
    %c0_1 = arith.constant 0 : index
    %c0_2 = arith.constant 0 : index
    %1 = vector.load %arg3[%c0_1, %c0_2] : memref<1x128xf32, #tpu.memory_space<vmem>>, vector<1x128xf32>
    %2 = vector.broadcast %1 : vector<1x128xf32> to vector<32x128xf32>
    %3 = arith.mulf %0, %2 : vector<32x128xf32>
    %c0_3 = arith.constant 0 : index
    %c0_4 = arith.constant 0 : index
    %4 = vector.load %arg4[%c0_3, %c0_4] : memref<1x128xf32, #tpu.memory_space<vmem>>, vector<1x128xf32>
    %5 = vector.broadcast %4 : vector<1x128xf32> to vector<32x128xf32>
    %6 = arith.addf %3, %5 : vector<32x128xf32>
    %cst = arith.constant 0.000000e+00 : f32
    %7 = vector.broadcast %cst : f32 to vector<32x128xf32>
    %8 = arith.maximumf %6, %7 : vector<32x128xf32>
    %c0_5 = arith.constant 0 : index
    %c0_6 = arith.constant 0 : index
    %9 = vector.load %arg5[%c0_5, %c0_6] : memref<32x128xf32, #tpu.memory_space<vmem>>, vector<32x128xf32>
    tpu.vector_store %arg5[%c0_5, %c0_6], %8 {strides = array<i32>} : memref<32x128xf32, #tpu.memory_space<vmem>>, vector<32x128xf32>,
    return
  }
  func.func @transform_0(%arg0: i32, %arg1: i32) -> (i32, i32) {
    %c0_i32 = arith.constant 0 : i32
    return %arg1, %arg0 : i32, i32
  }
  func.func @transform_1(%arg0: i32, %arg1: i32) -> (i32, i32) {
    %c0_i32 = arith.constant 0 : i32
    %c0_i32_0 = arith.constant 0 : i32
    return %c0_i32, %arg0 : i32, i32
  }
  func.func @transform_2(%arg0: i32, %arg1: i32) -> (i32, i32) {
    %c0_i32 = arith.constant 0 : i32
    %c0_i32_0 = arith.constant 0 : i32
    return %c0_i32, %arg0 : i32, i32
  }
  func.func @transform_3(%arg0: i32, %arg1: i32) -> (i32, i32) {
    %c0_i32 = arith.constant 0 : i32
    return %arg1, %arg0 : i32, i32
  }
}

</mosaic_0001>

<llo_original>
// kernel: tile.26
$region0: #{tile.26}
  #allocation0 [shape = 's32[1]{0}', space=sflag, size = 0x4, scoped, tag = 'scoped memory for tile.26']
  %s0 = inlined_call_operand.vmem [shape: f32[4], index: 0, kind: input, shape index: {}]
  %s1 = inlined_call_operand.vmem [shape: f32[16,4], index: 1, kind: output, shape index: {}]
  // Predicated region
  $region2: #{tile.26} parent=0 // pred_check
    _
  $region3: #{tile.26} parent=0 // pred_check_branch
    %3 = sbr.rel (0) target = $region5
  $region4: #{tile.26} parent=0 // pred_region
    _
  $region5: #{tile.26} parent=0 // pred_fallthru
    _
  %v4 = vld [vmem:[%s0] ss:$0 sm:$0xff]
  %5 = vst [vmem:[%s1] sm:$0xff] %v4
  %s6 = scalar_lea.vmem %s1, 8
  %7 = vst [vmem:[%s6] sm:$0xff] %v4

// kernel: tile.27
$region0: #{tile.27}
  %s0 = inlined_call_operand.vmem [shape: f32[16,4], index: 0, kind: input, shape index: {}]
  %s1 = inlined_call_operand.vmem [shape: f32[64], index: 1, kind: output, shape index: {}]
  $region1: #{tile.27} parent=0
    #allocation0 [shape = 'u8[4096]{0}', space=vmem, size = 0x1000, scoped, tag = 'scoped mem for output reshape']
    %v2 = vld [vmem:[%s0] sm:$0x1]
    %vm3 = vcmask 31744
    %4 = vst.msk [vmem:[#allocation0] sm:$0x1] %vm3, %v2
    %s5 = scalar_lea.vmem %s0, 15
    %v6 = vld [vmem:[%s5] sm:$0x1]
    %7 = vrot.lane.b32.xlu0 %v6, 60
    %v8 = vpop.permute.xlu0 %7
    %vm9 = vcmask 523744
    %10 = vst.msk [vmem:[#allocation0] sm:$0x1] %vm9, %v8
    %s11 = scalar_lea.vmem %s0, 14
    %v12 = vld [vmem:[%s11] sm:$0x1]
    %13 = vrot.lane.b32.xlu0 %v12, 56
    %v14 = vpop.permute.xlu0 %13
    %vm15 = vcmask 490944
    %16 = vst.msk [vmem:[#allocation0] sm:$0x1] %vm15, %v14
    %s17 = scalar_lea.vmem %s0, 13
    %v18 = vld [vmem:[%s17] sm:$0x1]
    %19 = vrot.lane.b32.xlu0 %v18, 52
    %v20 = vpop.permute.xlu0 %19
    %vm21 = vcmask 458144
    %22 = vst.msk [vmem:[#allocation0] sm:$0x1] %vm21, %v20
    %s23 = scalar_lea.vmem %s0, 12
    %v24 = vld [vmem:[%s23] sm:$0x1]
    %25 = vrot.lane.b32.xlu0 %v24, 48
    %v26 = vpop.permute.xlu0 %25
    %vm27 = vcmask 425344
    %28 = vst.msk [vmem:[#allocation0] sm:$0x1] %vm27, %v26
    %s29 = scalar_lea.vmem %s0, 11
    %v30 = vld [vmem:[%s29] sm:$0x1]
    %31 = vrot.lane.b32.xlu0 %v30, 44
    %v32 = vpop.permute.xlu0 %31
    %vm33 = vcmask 392544
    %34 = vst.msk [vmem:[#allocation0] sm:$0x1] %vm33, %v32
    %s35 = scalar_lea.vmem %s0, 10
    %v36 = vld [vmem:[%s35] sm:$0x1]
    %37 = vrot.lane.b32.xlu0 %v36, 40
    %v38 = vpop.permute.xlu0 %37
    %vm39 = vcmask 359744
    %40 = vst.msk [vmem:[#allocation0] sm:$0x1] %vm39, %v38
    %s41 = scalar_lea.vmem %s0, 9
    %v42 = vld [vmem:[%s41] sm:$0x1]
    %43 = vrot.lane.b32.xlu0 %v42, 36
    %v44 = vpop.permute.xlu0 %43
    %vm45 = vcmask 326944
    %46 = vst.msk [vmem:[#allocation0] sm:$0x1] %vm45, %v44
    %s47 = scalar_lea.vmem %s0, 8
    %v48 = vld [vmem:[%s47] sm:$0x1]
    %49 = vrot.lane.b32.xlu0 %v48, 32
    %v50 = vpop.permute.xlu0 %49
    %vm51 = vcmask 294144
    %52 = vst.msk [vmem:[#allocation0] sm:$0x1] %vm51, %v50
    %s53 = scalar_lea.vmem %s0, 7
    %v54 = vld [vmem:[%s53] sm:$0x1]
    %55 = vrot.lane.b32.xlu0 %v54, 28
    %v56 = vpop.permute.xlu0 %55
    %vm57 = vcmask 261344
    %58 = vst.msk [vmem:[#allocation0] sm:$0x1] %vm57, %v56
    %s59 = scalar_lea.vmem %s0, 6
    %v60 = vld [vmem:[%s59] sm:$0x1]
    %61 = vrot.lane.b32.xlu0 %v60, 24
    %v62 = vpop.permute.xlu0 %61
    %vm63 = vcmask 228544
    %64 = vst.msk [vmem:[#allocation0] sm:$0x1] %vm63, %v62
    %s65 = scalar_lea.vmem %s0, 5
    %v66 = vld [vmem:[%s65] sm:$0x1]
    %67 = vrot.lane.b32.xlu0 %v66, 20
    %v68 = vpop.permute.xlu0 %67
    %vm69 = vcmask 195744
    %70 = vst.msk [vmem:[#allocation0] sm:$0x1] %vm69, %v68
    %s71 = scalar_lea.vmem %s0, 4
    %v72 = vld [vmem:[%s71] sm:$0x1]
    %73 = vrot.lane.b32.xlu0 %v72, 16
    %v74 = vpop.permute.xlu0 %73
    %vm75 = vcmask 162944
    %76 = vst.msk [vmem:[#allocation0] sm:$0x1] %vm75, %v74
    %s77 = scalar_lea.vmem %s0, 3
    %v78 = vld [vmem:[%s77] sm:$0x1]
    %79 = vrot.lane.b32.xlu0 %v78, 12
    %v80 = vpop.permute.xlu0 %79
    %vm81 = vcmask 130144
    %82 = vst.msk [vmem:[#allocation0] sm:$0x1] %vm81, %v80
    %s83 = scalar_lea.vmem %s0, 2
    %v84 = vld [vmem:[%s83] sm:$0x1]
    %85 = vrot.lane.b32.xlu0 %v84, 8
    %v86 = vpop.permute.xlu0 %85
    %vm87 = vcmask 97344
    %88 = vst.msk [vmem:[#allocation0] sm:$0x1] %vm87, %v86
    %s89 = scalar_lea.vmem %s0, 1
    %v90 = vld [vmem:[%s89] sm:$0x1]
    %91 = vrot.lane.b32.xlu0 %v90, 4
    %v92 = vpop.permute.xlu0 %91
    %vm93 = vcmask 64544
    %94 = vst.msk [vmem:[#allocation0] sm:$0x1] %vm93, %v92
    %s96 = sshllo.u32 0, 1
    %v98 = vld [vmem:[#allocation0] sm:%s96]
    %s99 = sshllo.u32 0, 1
    %100 = vst [vmem:[%s1] sm:%s99] %v98

// kernel: dw_bn_relu.3
$region0: #{dw_bn_relu.3}
  #allocation0 [shape = 'u32[]', space=smem, size = 0x4, offset = 0x4, fixed_abs, tag = 'smem constant byte address 0x4 - core index']
  #allocation1 [shape = 'u32[144,128]{1,0:T(1,128)}', space=vmem, size = 0x12000, scoped, tag = 'internal scratch']
  %s0 = inlined_call_operand.vmem [shape: f32[32,128], index: 0, kind: input, shape index: {}, may-alias: {0,3}]
  %s1 = inlined_call_operand.vmem [shape: f32[1,128], index: 1, kind: input, shape index: {}]
  %s2 = inlined_call_operand.vmem [shape: f32[1,128], index: 2, kind: input, shape index: {}]
  %s3 = inlined_call_operand.vmem [shape: f32[32,128], index: 3, kind: output, shape index: {}, may-alias: {0,3}]
  %s4 = sld [smem:[#allocation0]]
  $region22: #{dw_bn_relu.3} parent=0
    _
  %s6 = ssub.s32 1, %s4
  %s7 = scalar_select 0, %s6, %s4
  // Predicated region
  $region2: #{dw_bn_relu.3} parent=0 // pred_check
    _
  $region3: #{dw_bn_relu.3} parent=0 // pred_check_branch
    %9 = sbr.rel (0) target = $region5
  $region4: #{dw_bn_relu.3} parent=0 // pred_region
    _
  $region5: #{dw_bn_relu.3} parent=0 // pred_fallthru
    _
  // Predicated region
  $region6: #{dw_bn_relu.3} parent=0 // pred_check
    _
  $region7: #{dw_bn_relu.3} parent=0 // pred_check_branch
    %11 = sbr.rel (0) target = $region9
  $region8: #{dw_bn_relu.3} parent=0 // pred_region
    _
  $region9: #{dw_bn_relu.3} parent=0 // pred_fallthru
    _
  // Predicated region
  $region10: #{dw_bn_relu.3} parent=0 // pred_check
    _
  $region11: #{dw_bn_relu.3} parent=0 // pred_check_branch
    %13 = sbr.rel (0) target = $region13
  $region12: #{dw_bn_relu.3} parent=0 // pred_region
    _
  $region13: #{dw_bn_relu.3} parent=0 // pred_fallthru
    _
  %v14 = vld [vmem:[%s0] sm:$0xff]
  %v15 = vld [vmem:[%s0 + $0x8] sm:$0xff]
  %v16 = vld [vmem:[%s0 + $0x10] sm:$0xff]
  %v17 = vld [vmem:[%s0 + $0x18] sm:$0xff]
  %v18 = vld [vmem:[%s1] sm:$0x1]
  %v20 = vlaneseq
  %v21 = vshrl.u32 %v20, 7
  %v22 = vsub.s32 0, %v21
  %v23 = vrot.slane %v18, %v22
  %v25 = vmul.f32 %v14, %v23
  %v26 = vmul.f32 %v15, %v23
  %v27 = vmul.f32 %v16, %v23
  %v28 = vmul.f32 %v17, %v23
  %v29 = vld [vmem:[%s2] sm:$0x1]
  %v31 = vlaneseq
  %v32 = vshrl.u32 %v31, 7
  %v33 = vsub.s32 0, %v32
  %v34 = vrot.slane %v29, %v33
  %v36 = vadd.f32 %v25, %v34
  %v37 = vadd.f32 %v26, %v34
  %v38 = vadd.f32 %v27, %v34
  %v39 = vadd.f32 %v28, %v34
  %v40 = vmax.f32 %v36, 0.0
  %v41 = vmax.f32 %v37, 0.0
  %v42 = vmax.f32 %v38, 0.0
  %v43 = vmax.f32 %v39, 0.0
  %44 = vst [vmem:[%s3] sm:$0xff] %v40
  %45 = vst [vmem:[%s3 + $0x8] sm:$0xff] %v41
  %46 = vst [vmem:[%s3 + $0x10] sm:$0xff] %v42
  %47 = vst [vmem:[%s3 + $0x18] sm:$0xff] %v43
  // Predicated region
  $region14: #{dw_bn_relu.3} parent=0 // pred_check
    _
  $region15: #{dw_bn_relu.3} parent=0 // pred_check_branch
    %49 = sbr.rel (0) target = $region17
  $region16: #{dw_bn_relu.3} parent=0 // pred_region
    _
  $region17: #{dw_bn_relu.3} parent=0 // pred_fallthru
    _
  // Predicated region
  $region18: #{dw_bn_relu.3} parent=0 // pred_check
    _
  $region19: #{dw_bn_relu.3} parent=0 // pred_check_branch
    %51 = sbr.rel (0) target = $region21
  $region20: #{dw_bn_relu.3} parent=0 // pred_region
    _
  $region21: #{dw_bn_relu.3} parent=0 // pred_fallthru
    _

// kernel: dw_bn_relu.2
$region0: #{dw_bn_relu.2}
  #allocation0 [shape = 'u32[]', space=smem, size = 0x4, offset = 0x4, fixed_abs, tag = 'smem constant byte address 0x4 - core index']
  #allocation1 [shape = 'u32[144,128]{1,0:T(1,128)}', space=vmem, size = 0x12000, scoped, tag = 'internal scratch']
  %s0 = inlined_call_operand.vmem [shape: f32[32,128], index: 0, kind: input, shape index: {}]
  %s1 = inlined_call_operand.vmem [shape: f32[9,128], index: 1, kind: input, shape index: {}]
  %s2 = inlined_call_operand.vmem [shape: s32[32,2], index: 2, kind: input, shape index: {}]
  %s3 = inlined_call_operand.vmem [shape: f32[32,128], index: 3, kind: output, shape index: {0}]
  %s4 = inlined_call_operand.vmem [shape: f32[1,1,128], index: 4, kind: output, shape index: {1}]
  %s5 = inlined_call_operand.vmem [shape: f32[1,1,128], index: 5, kind: output, shape index: {2}]
  %6 = xla_tuple %s3, %s4, %s5
  %s7 = sld [smem:[#allocation0]]
  $region38: #{dw_bn_relu.2} parent=0
    _
  %s9 = ssub.s32 1, %s7
  %s10 = scalar_select 0, %s9, %s7
  // Predicated region
  $region2: #{dw_bn_relu.2} parent=0 // pred_check
    _
  $region3: #{dw_bn_relu.2} parent=0 // pred_check_branch
    %12 = sbr.rel (0) target = $region5
  $region4: #{dw_bn_relu.2} parent=0 // pred_region
    _
  $region5: #{dw_bn_relu.2} parent=0 // pred_fallthru
    _
  // Predicated region
  $region6: #{dw_bn_relu.2} parent=0 // pred_check
    _
  $region7: #{dw_bn_relu.2} parent=0 // pred_check_branch
    %14 = sbr.rel (0) target = $region9
  $region8: #{dw_bn_relu.2} parent=0 // pred_region
    _
  $region9: #{dw_bn_relu.2} parent=0 // pred_fallthru
    _
  // Predicated region
  $region10: #{dw_bn_relu.2} parent=0 // pred_check
    _
  $region11: #{dw_bn_relu.2} parent=0 // pred_check_branch
    %16 = sbr.rel (0) target = $region13
  $region12: #{dw_bn_relu.2} parent=0 // pred_region
    _
  $region13: #{dw_bn_relu.2} parent=0 // pred_fallthru
    _
  %v17 = vld [vmem:[%s0] sm:$0xff]
  %v18 = vld [vmem:[%s0 + $0x8] sm:$0xff]
  %v19 = vld [vmem:[%s0 + $0x10] sm:$0xff]
  %v20 = vld [vmem:[%s0 + $0x18] sm:$0xff]
  %v21 = vld [vmem:[%s1] sm:$0xff]
  %v22 = vld [vmem:[%s1 + $0x8] sm:$0x1]
  %v23 = vld [vmem:[%s2] sm:$0xff]
  %v24 = vld [vmem:[%s2 + $0x8] sm:$0xff]
  %v25 = vld [vmem:[%s2 + $0x10] sm:$0xff]
  %v26 = vld [vmem:[%s2 + $0x18] sm:$0xff]
  %v27 = vlaneseq
  %v28 = vand.u32 %v27, 127
  %vm29 = vcmp.lt.s32.totalorder %v28, 4
  %30 = vrot.lane.b32.xlu0 %v17, 4
  %v31 = vpop.permute.xlu0 %30
  %32 = vrot.lane.b32.xlu0 %v18, 4
  %v33 = vpop.permute.xlu0 %32
  %34 = vrot.lane.b32.xlu0 %v19, 4
  %v35 = vpop.permute.xlu0 %34
  %36 = vrot.lane.b32.xlu0 %v20, 4
  %v37 = vpop.permute.xlu0 %36
  %v38 = vsel %vm29, 1, 0
  %vm39 = vcmp.eq.s32.totalorder %v38, 1
  %v40 = vsel %vm39, 0.0, %v31
  %v41 = vsel %vm39, 0.0, %v33
  %v42 = vsel %vm39, 0.0, %v35
  %v43 = vsel %vm39, 0.0, %v37
  %vm44 = vcmp.ge.s32.totalorder %v28, 60
  %45 = vrot.lane.b32.xlu0 %v17, 124
  %v46 = vpop.permute.xlu0 %45
  %47 = vrot.lane.b32.xlu0 %v18, 124
  %v48 = vpop.permute.xlu0 %47
  %49 = vrot.lane.b32.xlu0 %v19, 124
  %v50 = vpop.permute.xlu0 %49
  %51 = vrot.lane.b32.xlu0 %v20, 124
  %v52 = vpop.permute.xlu0 %51
  %v53 = vsel %vm44, 1, 0
  %vm54 = vcmp.eq.s32.totalorder %v53, 1
  %v55 = vsel %vm54, 0.0, %v46
  %v56 = vsel %vm54, 0.0, %v48
  %v57 = vsel %vm54, 0.0, %v50
  %v58 = vsel %vm54, 0.0, %v52
  %v59 = vlaneseq
  %v60 = vshrl.u32 %v59, 7
  %v61 = vsub.s32 0, %v60
  %v62 = vrot.slane %v21, %v61
  %v63 = vmul.f32 %v40, %v62
  %v64 = vmul.f32 %v41, %v62
  %v65 = vmul.f32 %v42, %v62
  %v66 = vmul.f32 %v43, %v62
  %v67 = vlaneseq
  %v68 = vshrl.u32 %v67, 7
  %v69 = vsub.s32 1, %v68
  %v70 = vrot.slane %v21, %v69
  %v71 = vmul.f32 %v17, %v70
  %v72 = vmul.f32 %v18, %v70
  %v73 = vmul.f32 %v19, %v70
  %v74 = vmul.f32 %v20, %v70
  %v75 = vadd.f32 %v63, %v71
  %v76 = vadd.f32 %v64, %v72
  %v77 = vadd.f32 %v65, %v73
  %v78 = vadd.f32 %v66, %v74
  %v79 = vlaneseq
  %v80 = vshrl.u32 %v79, 7
  %v81 = vsub.s32 2, %v80
  %v82 = vrot.slane %v21, %v81
  %v83 = vmul.f32 %v55, %v82
  %v84 = vmul.f32 %v56, %v82
  %v85 = vmul.f32 %v57, %v82
  %v86 = vmul.f32 %v58, %v82
  %v87 = vadd.f32 %v75, %v83
  %v88 = vadd.f32 %v76, %v84
  %v89 = vadd.f32 %v77, %v85
  %v90 = vadd.f32 %v78, %v86
  %v91 = vlaneseq
  %v92 = vshrl.u32 %v91, 7
  %v93 = vsub.s32 3, %v92
  %v94 = vrot.slane %v21, %v93
  %v95 = vmul.f32 %v40, %v94
  %v96 = vmul.f32 %v41, %v94
  %v97 = vmul.f32 %v42, %v94
  %v98 = vmul.f32 %v43, %v94
  %v99 = vlaneseq
  %v100 = vshrl.u32 %v99, 7
  %v101 = vsub.s32 4, %v100
  %v102 = vrot.slane %v21, %v101
  %v103 = vmul.f32 %v17, %v102
  %v104 = vmul.f32 %v18, %v102
  %v105 = vmul.f32 %v19, %v102
  %v106 = vmul.f32 %v20, %v102
  %v107 = vadd.f32 %v95, %v103
  %v108 = vadd.f32 %v96, %v104
  %v109 = vadd.f32 %v97, %v105
  %v110 = vadd.f32 %v98, %v106
  %v111 = vlaneseq
  %v112 = vshrl.u32 %v111, 7
  %v113 = vsub.s32 5, %v112
  %v114 = vrot.slane %v21, %v113
  %v115 = vmul.f32 %v55, %v114
  %v116 = vmul.f32 %v56, %v114
  %v117 = vmul.f32 %v57, %v114
  %v118 = vmul.f32 %v58, %v114
  %v119 = vadd.f32 %v107, %v115
  %v120 = vadd.f32 %v108, %v116
  %v121 = vadd.f32 %v109, %v117
  %v122 = vadd.f32 %v110, %v118
  %v123 = vlaneseq
  %v124 = vshrl.u32 %v123, 7
  %v125 = vsub.s32 6, %v124
  %v126 = vrot.slane %v21, %v125
  %v127 = vmul.f32 %v40, %v126
  %v128 = vmul.f32 %v41, %v126
  %v129 = vmul.f32 %v42, %v126
  %v130 = vmul.f32 %v43, %v126
  %v131 = vlaneseq
  %v132 = vshrl.u32 %v131, 7
  %v133 = vsub.s32 7, %v132
  %v134 = vrot.slane %v21, %v133
  %v135 = vmul.f32 %v17, %v134
  %v136 = vmul.f32 %v18, %v134
  %v137 = vmul.f32 %v19, %v134
  %v138 = vmul.f32 %v20, %v134
  %v139 = vadd.f32 %v127, %v135
  %v140 = vadd.f32 %v128, %v136
  %v141 = vadd.f32 %v129, %v137
  %v142 = vadd.f32 %v130, %v138
  %v143 = vlaneseq
  %v144 = vshrl.u32 %v143, 7
  %v145 = vsub.s32 0, %v144
  %v146 = vrot.slane %v22, %v145
  %v147 = vmul.f32 %v55, %v146
  %v148 = vmul.f32 %v56, %v146
  %v149 = vmul.f32 %v57, %v146
  %v150 = vmul.f32 %v58, %v146
  %v151 = vadd.f32 %v139, %v147
  %v152 = vadd.f32 %v140, %v148
  %v153 = vadd.f32 %v141, %v149
  %v154 = vadd.f32 %v142, %v150
  %vm155 = vcmp.eq.s32.totalorder %v23, 0
  %vm156 = vcmp.eq.s32.totalorder %v24, 0
  %vm157 = vcmp.eq.s32.totalorder %v25, 0
  %vm158 = vcmp.eq.s32.totalorder %v26, 0
  %v159 = vrot.slane %v87, 7
  %v160 = vrot.slane %v88, 7
  %v161 = vrot.slane %v89, 7
  %v162 = vrot.slane %v90, 7
  %v163 = vlaneseq
  %v164 = vshrl.u32 %v163, 7
  %vm165 = vcmp.lt.s32.totalorder %v164, 1
  %v166 = vsel %vm165, %v161, %v162
  %v167 = vsel %vm165, %v160, %v161
  %v168 = vsel %vm165, %v159, %v160
  %v169 = vsel %vm165, %v162, %v159
  %v170 = vsel %vm155, 1, 0
  %v171 = vsel %vm156, 1, 0
  %v172 = vsel %vm157, 1, 0
  %v173 = vsel %vm158, 1, 0
  %174 = vset.pattern.permute.xlu0 0
  %175 = vperm.xlu0 %174, %v170
  %v176 = vpop.permute.xlu0 %175
  %177 = vset.pattern.permute.xlu0 0
  %178 = vperm.xlu0 %177, %v171
  %v179 = vpop.permute.xlu0 %178
  %180 = vset.pattern.permute.xlu0 0
  %181 = vperm.xlu0 %180, %v172
  %v182 = vpop.permute.xlu0 %181
  %183 = vset.pattern.permute.xlu0 0
  %184 = vperm.xlu0 %183, %v173
  %v185 = vpop.permute.xlu0 %184
  %vm186 = vcmp.eq.s32.totalorder %v176, 1
  %vm187 = vcmp.eq.s32.totalorder %v179, 1
  %vm188 = vcmp.eq.s32.totalorder %v182, 1
  %vm189 = vcmp.eq.s32.totalorder %v185, 1
  %v190 = vsel %vm186, 0.0, %v169
  %v191 = vsel %vm187, 0.0, %v168
  %v192 = vsel %vm188, 0.0, %v167
  %v193 = vsel %vm189, 0.0, %v166
  %v194 = vadd.f32 %v119, %v190
  %v195 = vadd.f32 %v120, %v191
  %v196 = vadd.f32 %v121, %v192
  %v197 = vadd.f32 %v122, %v193
  %vm198 = vcmp.eq.s32.totalorder %v23, 15
  %vm199 = vcmp.eq.s32.totalorder %v24, 15
  %vm200 = vcmp.eq.s32.totalorder %v25, 15
  %vm201 = vcmp.eq.s32.totalorder %v26, 15
  %v202 = vrot.slane %v151, 1
  %v203 = vrot.slane %v152, 1
  %v204 = vrot.slane %v153, 1
  %v205 = vrot.slane %v154, 1
  %vm206 = vcmp.lt.s32.totalorder %v164, 7
  %v207 = vsel %vm206, %v204, %v205
  %v208 = vsel %vm206, %v203, %v204
  %v209 = vsel %vm206, %v202, %v203
  %v210 = vsel %vm206, %v205, %v202
  %v211 = vsel %vm198, 1, 0
  %v212 = vsel %vm199, 1, 0
  %v213 = vsel %vm200, 1, 0
  %v214 = vsel %vm201, 1, 0
  %215 = vset.pattern.permute.xlu0 0
  %216 = vperm.xlu0 %215, %v211
  %v217 = vpop.permute.xlu0 %216
  %218 = vset.pattern.permute.xlu0 0
  %219 = vperm.xlu0 %218, %v212
  %v220 = vpop.permute.xlu0 %219
  %221 = vset.pattern.permute.xlu0 0
  %222 = vperm.xlu0 %221, %v213
  %v223 = vpop.permute.xlu0 %222
  %224 = vset.pattern.permute.xlu0 0
  %225 = vperm.xlu0 %224, %v214
  %v226 = vpop.permute.xlu0 %225
  %vm227 = vcmp.eq.s32.totalorder %v217, 1
  %vm228 = vcmp.eq.s32.totalorder %v220, 1
  %vm229 = vcmp.eq.s32.totalorder %v223, 1
  %vm230 = vcmp.eq.s32.totalorder %v226, 1
  %v231 = vsel %vm227, 0.0, %v209
  %v232 = vsel %vm228, 0.0, %v208
  %v233 = vsel %vm229, 0.0, %v207
  %v234 = vsel %vm230, 0.0, %v210
  %v235 = vadd.f32 %v194, %v231
  %v236 = vadd.f32 %v195, %v232
  %v237 = vadd.f32 %v196, %v233
  %v238 = vadd.f32 %v197, %v234
  %239 = vst [vmem:[%s3] sm:$0xff] %v235
  %240 = vst [vmem:[%s3 + $0x8] sm:$0xff] %v236
  %241 = vst [vmem:[%s3 + $0x10] sm:$0xff] %v237
  %242 = vst [vmem:[%s3 + $0x18] sm:$0xff] %v238
  %v243 = vadd.f32 %v235, %v236
  %v244 = vadd.f32 %v243, %v237
  %v245 = vadd.f32 %v244, %v238
  %v246 = vrot.slane %v245, 4
  %v247 = vadd.f32 %v245, %v246
  %v248 = vrot.slane %v247, 2
  %v249 = vadd.f32 %v247, %v248
  %v250 = vrot.slane %v249, 1
  %v251 = vadd.f32 %v249, %v250
  %252 = vst [vmem:[%s4] sm:$0x1] %v251
  %v253 = vmul.f32 %v235, %v235
  %v254 = vmul.f32 %v236, %v236
  %v255 = vmul.f32 %v237, %v237
  %v256 = vmul.f32 %v238, %v238
  %v257 = vadd.f32 %v253, %v254
  %v258 = vadd.f32 %v257, %v255
  %v259 = vadd.f32 %v258, %v256
  %v260 = vrot.slane %v259, 4
  %v261 = vadd.f32 %v259, %v260
  %v262 = vrot.slane %v261, 2
  %v263 = vadd.f32 %v261, %v262
  %v264 = vrot.slane %v263, 1
  %v265 = vadd.f32 %v263, %v264
  %266 = vst [vmem:[%s5] sm:$0x1] %v265
  // Predicated region
  $region14: #{dw_bn_relu.2} parent=0 // pred_check
    _
  $region15: #{dw_bn_relu.2} parent=0 // pred_check_branch
    %268 = sbr.rel (0) target = $region17
  $region16: #{dw_bn_relu.2} parent=0 // pred_region
    _
  $region17: #{dw_bn_relu.2} parent=0 // pred_fallthru
    _
  // Predicated region
  $region18: #{dw_bn_relu.2} parent=0 // pred_check
    _
  $region19: #{dw_bn_relu.2} parent=0 // pred_check_branch
    %270 = sbr.rel (0) target = $region21
  $region20: #{dw_bn_relu.2} parent=0 // pred_region
    _
  $region21: #{dw_bn_relu.2} parent=0 // pred_fallthru
    _
  // Predicated region
  $region22: #{dw_bn_relu.2} parent=0 // pred_check
    _
  $region23: #{dw_bn_relu.2} parent=0 // pred_check_branch
    %272 = sbr.rel (0) target = $region25
  $region24: #{dw_bn_relu.2} parent=0 // pred_region
    _
  $region25: #{dw_bn_relu.2} parent=0 // pred_fallthru
    _
  // Predicated region
  $region26: #{dw_bn_relu.2} parent=0 // pred_check
    _
  $region27: #{dw_bn_relu.2} parent=0 // pred_check_branch
    %274 = sbr.rel (0) target = $region29
  $region28: #{dw_bn_relu.2} parent=0 // pred_region
    _
  $region29: #{dw_bn_relu.2} parent=0 // pred_fallthru
    _
  // Predicated region
  $region30: #{dw_bn_relu.2} parent=0 // pred_check
    _
  $region31: #{dw_bn_relu.2} parent=0 // pred_check_branch
    %276 = sbr.rel (0) target = $region33
  $region32: #{dw_bn_relu.2} parent=0 // pred_region
    _
  $region33: #{dw_bn_relu.2} parent=0 // pred_fallthru
    _
  // Predicated region
  $region34: #{dw_bn_relu.2} parent=0 // pred_check
    _
  $region35: #{dw_bn_relu.2} parent=0 // pred_check_branch
    %278 = sbr.rel (0) target = $region37
  $region36: #{dw_bn_relu.2} parent=0 // pred_region
    _
  $region37: #{dw_bn_relu.2} parent=0 // pred_fallthru
    _

</llo_original>
